<compile_context>
chip_gen: v7x
topology: tpu7x:2x2x1
jax: 0.10.0
libtpu: 0.0.40
codegen_flags: <defaults>
</compile_context>

<pallas_src>
import jax
import jax.numpy as jnp
from jax import lax
from jax.experimental import pallas as pl
from jax.experimental.pallas import tpu as pltpu

_LANE = 128
_VMEM_LIMIT_BYTES = 48 * 1024 * 1024        # safe on v5e/v6e (128 MiB phys) and v7x (64 MiB phys)
_DEFAULT_STREAM_BUDGET = 32 * 1024 * 1024   # budget for double-buffered streamed tiles
_SMALL_PATH_BYTES = 8 * 1024 * 1024         # fused (single-step) path threshold


def _round_up(v, m):
    return ((v + m - 1) // m) * m


def _pick_n_tile(n_pad, m_pad, itemsize, budget_bytes):
    """Largest multiple of 128 dividing n_pad whose double-buffered streamed
    footprint (2 arrays x 2 buffers x tn x m_pad x itemsize) fits the budget."""
    cap = budget_bytes // (4 * m_pad * itemsize)
    cap = max(_LANE, min(2048, (cap // _LANE) * _LANE))
    best = _LANE
    t = _LANE
    while t <= min(cap, n_pad):
        if n_pad % t == 0:
            best = t
        t += _LANE
    return best


# ----------------------------------------------------------------------------
# Kernels
# ----------------------------------------------------------------------------
def _fused_kernel(x_ref, w_ref, lwt_ref, lb_ref, o_ref):
    # x_ref  : (1, M_pad)      bf16
    # w_ref  : (N_pad, M_pad)  bf16   (self.weight, padded)
    # lwt_ref: (N_pad, M_pad)  bf16   (self.linear.weight TRANSPOSED, padded)
    # lb_ref : (1, M_pad)      f32    (self.linear.bias, padded)
    # o_ref  : (1, M_pad)      f32
    y = lax.dot_general(
        x_ref[...], w_ref[...],
        dimension_numbers=(((1,), (1,)), ((), ())),
        preferred_element_type=jnp.float32,
    )  # (1, N_pad) f32
    z = lax.dot_general(
        y.astype(lwt_ref.dtype), lwt_ref[...],
        dimension_numbers=(((1,), (0,)), ((), ())),
        preferred_element_type=jnp.float32,
    )  # (1, M_pad) f32
    o_ref[...] = z + lb_ref[...]


def _stream_kernel(x_ref, w_ref, lwt_ref, o_ref):
    # x_ref  : (1, M_pad)    bf16  resident across the reduction
    # w_ref  : (tn, M_pad)   bf16  current N-tile of weight (row-contiguous)
    # lwt_ref: (tn, M_pad)   bf16  current N-tile of lin_w^T (row-contiguous)
    # o_ref  : (1, 1, M_pad) f32   per-split partial sum, VMEM-resident across k
    k = pl.program_id(1)

    @pl.when(k == 0)
    def _():
        o_ref[...] = jnp.zeros_like(o_ref)

    y = lax.dot_general(
        x_ref[...], w_ref[...],
        dimension_numbers=(((1,), (1,)), ((), ())),
        preferred_element_type=jnp.float32,
    )  # (1, tn) f32
    z = lax.dot_general(
        y.astype(lwt_ref.dtype), lwt_ref[...],
        dimension_numbers=(((1,), (0,)), ((), ())),
        preferred_element_type=jnp.float32,
    )  # (1, M_pad) f32
    o_ref[...] += z.reshape(o_ref.shape)


# ----------------------------------------------------------------------------
# Wrappers
# ----------------------------------------------------------------------------
def prepare_params(weight, lin_w, lin_b, *, stream_dtype=jnp.bfloat16):
    """One-time padding / casting / pre-transpose of the module parameters.
    Done at init so the per-call forward only streams each matrix once."""
    N, M = weight.shape
    assert lin_w.shape == (M, N)
    assert lin_b.shape == (M,)
    M_pad = _round_up(M, _LANE)
    N_pad = _round_up(N, _LANE)

    w_p = jnp.zeros((N_pad, M_pad), stream_dtype).at[:N, :M].set(
        weight.astype(stream_dtype))
    # Pre-transposed linear weight: row n holds lin_w[:, n]  -> row-contiguous N-tiles
    lwt_p = jnp.zeros((N_pad, M_pad), stream_dtype).at[:N, :M].set(
        lin_w.T.astype(stream_dtype))
    b_p = jnp.zeros((1, M_pad), jnp.float32).at[0, :M].set(
        lin_b.astype(jnp.float32))

    return dict(w=w_p, lwt=lwt_p, b=b_p, N=N, M=M, N_pad=N_pad, M_pad=M_pad)


def mymodule_forward(x, params, *, force_stream=False,
                     stream_budget_bytes=_DEFAULT_STREAM_BUDGET):
    """x: (M,) f32 -> (M,) f32, using pre-padded bf16 params from prepare_params."""
    N, M = params["N"], params["M"]
    N_pad, M_pad = params["N_pad"], params["M_pad"]
    w_p, lwt_p, b_p = params["w"], params["lwt"], params["b"]
    assert x.shape == (M,)

    itemsize = jnp.dtype(w_p.dtype).itemsize
    streamed_bytes = 2 * N_pad * M_pad * itemsize
    flops = 4 * N_pad * M_pad

    # Only the tiny input vector is padded per call.
    x2 = jnp.zeros((1, M_pad), w_p.dtype).at[0, :M].set(x.astype(w_p.dtype))

    # ---------------- fused fast path (both matrices fit in VMEM) ----------------
    if (not force_stream) and streamed_bytes <= _SMALL_PATH_BYTES:
        out = pl.pallas_call(
            _fused_kernel,
            out_shape=jax.ShapeDtypeStruct((1, M_pad), jnp.float32),
            grid=(1,),
            in_specs=[
                pl.BlockSpec((1, M_pad), lambda i: (0, 0)),
                pl.BlockSpec((N_pad, M_pad), lambda i: (0, 0)),
                pl.BlockSpec((N_pad, M_pad), lambda i: (0, 0)),
                pl.BlockSpec((1, M_pad), lambda i: (0, 0)),
            ],
            out_specs=pl.BlockSpec((1, M_pad), lambda i: (0, 0)),
            cost_estimate=pl.CostEstimate(
                flops=flops, transcendentals=0,
                bytes_accessed=streamed_bytes + 16 * M_pad),
        )(x2, w_p, lwt_p, b_p)
        return out[0, :M]

    # ---------------- streaming path (N-reduction over row-contiguous tiles) ----
    tn = _pick_n_tile(N_pad, M_pad, itemsize, stream_budget_bytes)
    n_tiles = N_pad // tn
    # Split the N stream across the two v7x TensorCores when there is enough work;
    # harmless (size-1 or sequential) on single-TC chips.
    num_splits = 2 if (n_tiles % 2 == 0 and n_tiles >= 2) else 1
    steps = n_tiles // num_splits

    partial = pl.pallas_call(
        _stream_kernel,
        out_shape=jax.ShapeDtypeStruct((num_splits, 1, M_pad), jnp.float32),
        grid=(num_splits, steps),
        in_specs=[
            pl.BlockSpec((1, M_pad), lambda c, k: (0, 0)),                # x (resident)
            pl.BlockSpec((tn, M_pad), lambda c, k: (c * steps + k, 0)),   # W  N-tile
            pl.BlockSpec((tn, M_pad), lambda c, k: (c * steps + k, 0)),   # lin_w^T N-tile
        ],
        out_specs=pl.BlockSpec((1, 1, M_pad), lambda c, k: (c, 0, 0)),
        compiler_params=pltpu.CompilerParams(
            dimension_semantics=("parallel", "arbitrary"),
            vmem_limit_bytes=_VMEM_LIMIT_BYTES,
        ),
        cost_estimate=pl.CostEstimate(
            flops=flops, transcendentals=0,
            bytes_accessed=streamed_bytes + 4 * M_pad * (2 + num_splits)),
    )(x2, w_p, lwt_p)

    # Tiny epilogue: reduce per-core partial sums and add the bias.
    z = partial.sum(axis=(0, 1)) + b_p[0]
    return z[:M]


# ----------------------------------------------------------------------------
# Self-test
# ----------------------------------------------------------------------------
if __name__ == "__main__":
    key = jax.random.PRNGKey(0)

    def make_inputs(k, N, M):
        k_w, k_lw, k_lb, k_x = jax.random.split(k, 4)
        weight = jax.random.uniform(k_w, (N, M), dtype=jnp.float32)       # torch.rand(N, M)
        bound = 1.0 / float(N) ** 0.5
        lin_w = jax.random.uniform(k_lw, (M, N), dtype=jnp.float32,
                                   minval=-bound, maxval=bound)           # Linear(N, M).weight
        lin_b = jax.random.uniform(k_lb, (M,), dtype=jnp.float32,
                                   minval=-bound, maxval=bound)           # Linear(N, M).bias
        x = jax.random.normal(k_x, (M,), dtype=jnp.float32)
        return weight, lin_w, lin_b, x

    def quantized_ref(x, weight, lin_w, lin_b):
        # Same math as the kernel: bf16-quantized streamed operands, f32 accumulation.
        bf = lambda a: a.astype(jnp.bfloat16).astype(jnp.float32)
        y = bf(weight) @ bf(x)
        return bf(lin_w) @ bf(y) + lin_b

    k1, k2 = jax.random.split(key)

    # --- test 1: small module shapes (fused fast path) ---
    N, M = 16, 32
    weight, lin_w, lin_b, x = make_inputs(k1, N, M)
    params = prepare_params(weight, lin_w, lin_b)
    out = mymodule_forward(x, params)
    jax.block_until_ready(out)
    ref = quantized_ref(x, weight, lin_w, lin_b)
    assert out.shape == (M,)
    assert jnp.allclose(out, ref, atol=2e-3, rtol=2e-3), "fused-path mismatch"

    # --- test 2: exercise the streamed / multi-tile / split-reduction path ---
    N2, M2 = 2000, 250
    weight2, lin_w2, lin_b2, x2 = make_inputs(k2, N2, M2)
    params2 = prepare_params(weight2, lin_w2, lin_b2)
    out2 = mymodule_forward(x2, params2, force_stream=True,
                            stream_budget_bytes=1 << 20)   # small budget -> multiple N tiles
    jax.block_until_ready(out2)
    ref2 = quantized_ref(x2, weight2, lin_w2, lin_b2)
    assert out2.shape == (M2,)
    assert jnp.allclose(out2, ref2, atol=5e-3, rtol=5e-3), "stream-path mismatch"

    print("KERNEL_OK")
</pallas_src>

<mosaic_0001>
module attributes {stable_mosaic.version = 11 : i64} {
  func.func @_fused_kernel(%arg0: i32, %arg1: memref<1x128xbf16, #tpu.memory_space<vmem>>, %arg2: memref<128x128xbf16, #tpu.memory_space<vmem>>, %arg3: memref<128x128xbf16, #tpu.memory_space<vmem>>, %arg4: memref<1x128xf32, #tpu.memory_space<vmem>>, %arg5: memref<1x128xf32, #tpu.memory_space<vmem>>) attributes {dimension_semantics = [#tpu.dimension_semantics<arbitrary>], iteration_bounds = array<i64: 1>, scalar_prefetch = 0 : i64, scratch_operands = 0 : i64, tpu.core_type = #tpu.core_type<tc>, window_params = [{pipeline_mode = #tpu.pipeline_mode<synchronous>, transform_indices = @transform_0, window_bounds = array<i64: 1, 128>}, {pipeline_mode = #tpu.pipeline_mode<synchronous>, transform_indices = @transform_1, window_bounds = array<i64: 128, 128>}, {pipeline_mode = #tpu.pipeline_mode<synchronous>, transform_indices = @transform_2, window_bounds = array<i64: 128, 128>}, {pipeline_mode = #tpu.pipeline_mode<synchronous>, transform_indices = @transform_3, window_bounds = array<i64: 1, 128>}, {pipeline_mode = #tpu.pipeline_mode<synchronous>, transform_indices = @transform_4, window_bounds = array<i64: 1, 128>}]} {
    %c0 = arith.constant 0 : index
    %c0_0 = arith.constant 0 : index
    %0 = vector.load %arg1[%c0, %c0_0] : memref<1x128xbf16, #tpu.memory_space<vmem>>, vector<1x128xbf16>
    %c0_1 = arith.constant 0 : index
    %c0_2 = arith.constant 0 : index
    %1 = vector.load %arg2[%c0_1, %c0_2] : memref<128x128xbf16, #tpu.memory_space<vmem>>, vector<128x128xbf16>
    %cst = arith.constant dense<0.000000e+00> : vector<1x128xf32>
    %2 = tpu.matmul %0, %1, %cst {dimension_numbers = #tpu.dot_dimension_numbers<[1], [1], [0], [0], [0, 0, 1, 0], [], []>} : vector<1x128xbf16>, vector<128x128xbf16>, vector<1x128xf32> -> vector<1x128xf32>
    %3 = arith.truncf %2 : vector<1x128xf32> to vector<1x128xbf16>
    %c0_3 = arith.constant 0 : index
    %c0_4 = arith.constant 0 : index
    %4 = vector.load %arg3[%c0_3, %c0_4] : memref<128x128xbf16, #tpu.memory_space<vmem>>, vector<128x128xbf16>
    %cst_5 = arith.constant dense<0.000000e+00> : vector<1x128xf32>
    %5 = tpu.matmul %3, %4, %cst_5 {dimension_numbers = #tpu.dot_dimension_numbers<[1], [0], [0], [1], [0, 0, 1, 1], [], []>} : vector<1x128xbf16>, vector<128x128xbf16>, vector<1x128xf32> -> vector<1x128xf32>
    %c0_6 = arith.constant 0 : index
    %c0_7 = arith.constant 0 : index
    %6 = vector.load %arg4[%c0_6, %c0_7] : memref<1x128xf32, #tpu.memory_space<vmem>>, vector<1x128xf32>
    %7 = arith.addf %5, %6 : vector<1x128xf32>
    %c0_8 = arith.constant 0 : index
    %c0_9 = arith.constant 0 : index
    %8 = vector.load %arg5[%c0_8, %c0_9] : memref<1x128xf32, #tpu.memory_space<vmem>>, vector<1x128xf32>
    tpu.vector_store %arg5[%c0_8, %c0_9], %7 {strides = array<i32>} : memref<1x128xf32, #tpu.memory_space<vmem>>, vector<1x128xf32>,
    return
  }
  func.func @transform_0(%arg0: i32) -> (i32, i32) {
    %c0_i32 = arith.constant 0 : i32
    %c0_i32_0 = arith.constant 0 : i32
    %c0_i32_1 = arith.constant 0 : i32
    return %c0_i32, %c0_i32_0 : i32, i32
  }
  func.func @transform_1(%arg0: i32) -> (i32, i32) {
    %c0_i32 = arith.constant 0 : i32
    %c0_i32_0 = arith.constant 0 : i32
    %c0_i32_1 = arith.constant 0 : i32
    return %c0_i32, %c0_i32_0 : i32, i32
  }
  func.func @transform_2(%arg0: i32) -> (i32, i32) {
    %c0_i32 = arith.constant 0 : i32
    %c0_i32_0 = arith.constant 0 : i32
    %c0_i32_1 = arith.constant 0 : i32
    return %c0_i32, %c0_i32_0 : i32, i32
  }
  func.func @transform_3(%arg0: i32) -> (i32, i32) {
    %c0_i32 = arith.constant 0 : i32
    %c0_i32_0 = arith.constant 0 : i32
    %c0_i32_1 = arith.constant 0 : i32
    return %c0_i32, %c0_i32_0 : i32, i32
  }
  func.func @transform_4(%arg0: i32) -> (i32, i32) {
    %c0_i32 = arith.constant 0 : i32
    %c0_i32_0 = arith.constant 0 : i32
    %c0_i32_1 = arith.constant 0 : i32
    return %c0_i32, %c0_i32_0 : i32, i32
  }
}

</mosaic_0001>

<llo_original>
// kernel: tpu_custom_call.1
$region0: #{tpu_custom_call.1}
  #allocation0 [shape = 'u32[]', space=smem, size = 0x4, offset = 0x4, fixed_abs, tag = 'smem constant byte address 0x4 - core index']
  #allocation1 [shape = 'u32[144,128]{1,0:T(1,128)}', space=vmem, size = 0x12000, scoped, tag = 'internal scratch']
  %s0 = inlined_call_operand.hbm [shape: bf16[1,128], index: 0, kind: input, shape index: {}]
  %s1 = inlined_call_operand.hbm [shape: bf16[128,128], index: 1, kind: input, shape index: {}]
  %s2 = inlined_call_operand.hbm [shape: bf16[128,128], index: 2, kind: input, shape index: {}]
  %s3 = inlined_call_operand.vmem [shape: f32[1,128], index: 3, kind: input, shape index: {}]
  %s4 = inlined_call_operand.hbm [shape: f32[1,128], index: 4, kind: output, shape index: {}]
  %s5 = sld [smem:[#allocation0]]
  $region38: #{tpu_custom_call.1} parent=0
    _
  %s7 = ssub.s32 1, %s5
  %s8 = scalar_select 0, %s7, %s5
  $region1: #{tpu_custom_call.1} parent=0
    #allocation2 [shape = 'u8[512]{0}', space=vmem, size = 0x400, scoped, tag = 'input window, operand 0, single buffered']
    #allocation3 [shape = 's32[1]{0}', space=sflag, size = 0x4, scoped, tag = 'scoped memory for tpu_custom_call.1']
    #allocation4 [shape = 's32[1]{0}', space=sflag, size = 0x4, scoped, tag = 'scoped memory for tpu_custom_call.1']
    #allocation5 [shape = 'u8[32768]{0}', space=vmem, size = 0x8000, scoped, tag = 'input window, operand 1, single buffered']
    #allocation6 [shape = 's32[1]{0}', space=sflag, size = 0x4, scoped, tag = 'scoped memory for tpu_custom_call.1']
    #allocation7 [shape = 'u8[32768]{0}', space=vmem, size = 0x8000, scoped, tag = 'input window, operand 2, single buffered']
    #allocation8 [shape = 'u8[512]{0}', space=vmem, size = 0x400, scoped, tag = 'output window, operand 0, single buffered']
    %9 = vsyncpa [#allocation3], 0
    %10 = vsyncpa [#allocation6], 0
    %11 = vsyncpa [#allocation4], 0
    // Predicated region
    $region2: #{tpu_custom_call.1} parent=1 // pred_check
      _
    $region3: #{tpu_custom_call.1} parent=1 // pred_check_branch
      %13 = sbr.rel (0) target = $region5
    $region4: #{tpu_custom_call.1} parent=1 // pred_region
      %s15 = ssub.s32 16, 16
      %16 = vsyncadd [#allocation3], %s15
      %s18 = sshll.u32 [#allocation2], 4
      %s19 = int_to_ptr.vmem [resolvable:$true] %s18
      %21 = dma.hbm_to_vmem [thread:$0]  %s0, 16, %s19, [#allocation3]
    $region5: #{tpu_custom_call.1} parent=1 // pred_fallthru
      _
    // Predicated region
    $region6: #{tpu_custom_call.1} parent=1 // pred_check
      _
    $region7: #{tpu_custom_call.1} parent=1 // pred_check_branch
      %23 = sbr.rel (0) target = $region9
    $region8: #{tpu_custom_call.1} parent=1 // pred_region
      %s25 = ssub.s32 1024, 1024
      %26 = vsyncadd [#allocation6], %s25
      %s27 = sshll.u32 [#allocation5], 4
      %s28 = int_to_ptr.vmem [resolvable:$true] %s27
      %33 = dma.hbm_to_vmem [thread:$0]  %s1, 1024, %s28, [#allocation6], 64, 64, 4
    $region9: #{tpu_custom_call.1} parent=1 // pred_fallthru
      _
    // Predicated region
    $region10: #{tpu_custom_call.1} parent=1 // pred_check
      _
    $region11: #{tpu_custom_call.1} parent=1 // pred_check_branch
      %35 = sbr.rel (0) target = $region13
    $region12: #{tpu_custom_call.1} parent=1 // pred_region
      %s37 = ssub.s32 1024, 1024
      %38 = vsyncadd [#allocation6], %s37
      %s39 = sshll.u32 [#allocation7], 4
      %s40 = int_to_ptr.vmem [resolvable:$true] %s39
      %45 = dma.hbm_to_vmem [thread:$0]  %s2, 1024, %s40, [#allocation6], 64, 64, 4
    $region13: #{tpu_custom_call.1} parent=1 // pred_fallthru
      _
    // Predicated region
    $region14: #{tpu_custom_call.1} parent=1 // pred_check
      _
    $region15: #{tpu_custom_call.1} parent=1 // pred_check_branch
      %47 = sbr.rel (0) target = $region17
    $region16: #{tpu_custom_call.1} parent=1 // pred_region
      _
    $region17: #{tpu_custom_call.1} parent=1 // pred_fallthru
      _
    // Predicated region
    $region18: #{tpu_custom_call.1} parent=1 // pred_check
      _
    $region19: #{tpu_custom_call.1} parent=1 // pred_check_branch
      %49 = sbr.rel (0) target = $region21
    $region20: #{tpu_custom_call.1} parent=1 // pred_region
      %50 = dma.done [#allocation3], 16
    $region21: #{tpu_custom_call.1} parent=1 // pred_fallthru
      _
    // Predicated region
    $region22: #{tpu_custom_call.1} parent=1 // pred_check
      _
    $region23: #{tpu_custom_call.1} parent=1 // pred_check_branch
      %52 = sbr.rel (0) target = $region25
    $region24: #{tpu_custom_call.1} parent=1 // pred_region
      %53 = dma.done [#allocation6], 1024
    $region25: #{tpu_custom_call.1} parent=1 // pred_fallthru
      _
    // Predicated region
    $region26: #{tpu_custom_call.1} parent=1 // pred_check
      _
    $region27: #{tpu_custom_call.1} parent=1 // pred_check_branch
      %55 = sbr.rel (0) target = $region29
    $region28: #{tpu_custom_call.1} parent=1 // pred_region
      %56 = dma.done [#allocation6], 1024
    $region29: #{tpu_custom_call.1} parent=1 // pred_fallthru
      _
    %v58 = vld [vmem:[#allocation2] sm:$0x1]
    %v59 = vld [vmem:[#allocation5] sm:$0xf]
    %v60 = vld [vmem:[#allocation5 + $0x4] sm:$0xf]
    %v61 = vld [vmem:[#allocation5 + $0x8] sm:$0xf]
    %v62 = vld [vmem:[#allocation5 + $0xc] sm:$0xf]
    %v63 = vld [vmem:[#allocation5 + $0x10] sm:$0xf]
    %v64 = vld [vmem:[#allocation5 + $0x14] sm:$0xf]
    %v65 = vld [vmem:[#allocation5 + $0x18] sm:$0xf]
    %v66 = vld [vmem:[#allocation5 + $0x1c] sm:$0xf]
    %v67 = vld [vmem:[#allocation5 + $0x20] sm:$0xf]
    %v68 = vld [vmem:[#allocation5 + $0x24] sm:$0xf]
    %v69 = vld [vmem:[#allocation5 + $0x28] sm:$0xf]
    %v70 = vld [vmem:[#allocation5 + $0x2c] sm:$0xf]
    %v71 = vld [vmem:[#allocation5 + $0x30] sm:$0xf]
    %v72 = vld [vmem:[#allocation5 + $0x34] sm:$0xf]
    %v73 = vld [vmem:[#allocation5 + $0x38] sm:$0xf]
    %v74 = vld [vmem:[#allocation5 + $0x3c] sm:$0xf]
    %v91 = vunpack.c.l.b16 %v59
    %v92 = vunpack.c.l.b16 %v60
    %v93 = vunpack.c.l.b16 %v61
    %v94 = vunpack.c.l.b16 %v62
    %v95 = vunpack.c.l.b16 %v63
    %v96 = vunpack.c.l.b16 %v64
    %v97 = vunpack.c.l.b16 %v65
    %v98 = vunpack.c.l.b16 %v66
    %v99 = vunpack.c.l.b16 %v67
    %v100 = vunpack.c.l.b16 %v68
    %v101 = vunpack.c.l.b16 %v69
    %v102 = vunpack.c.l.b16 %v70
    %v103 = vunpack.c.l.b16 %v71
    %v104 = vunpack.c.l.b16 %v72
    %v105 = vunpack.c.l.b16 %v73
    %v106 = vunpack.c.l.b16 %v74
    %v107 = vpack.c.b16 %v92, %v91
    %v108 = vpack.c.b16 %v94, %v93
    %v109 = vpack.c.b16 %v96, %v95
    %v110 = vpack.c.b16 %v98, %v97
    %v111 = vpack.c.b16 %v100, %v99
    %v112 = vpack.c.b16 %v102, %v101
    %v113 = vpack.c.b16 %v104, %v103
    %v114 = vpack.c.b16 %v106, %v105
    %123 = vmatprep.subr.bf16.mxu0 0
    %124 = vmatpush1.bf16.xpose.msra.mxu0 %v107
    %125 = vmatprep.subr.bf16.mxu0 0
    %126 = vmatpush1.bf16.xpose.msra.mxu0 %v108
    %127 = vmatprep.subr.bf16.mxu0 0
    %128 = vmatpush1.bf16.xpose.msra.mxu0 %v109
    %129 = vmatprep.subr.bf16.mxu0 0
    %130 = vmatpush1.bf16.xpose.msra.mxu0 %v110
    %131 = vmatprep.subr.bf16.mxu0 0
    %132 = vmatpush1.bf16.xpose.msra.mxu0 %v111
    %133 = vmatprep.subr.bf16.mxu0 0
    %134 = vmatpush1.bf16.xpose.msra.mxu0 %v112
    %135 = vmatprep.subr.bf16.mxu0 0
    %136 = vmatpush1.bf16.xpose.msra.mxu0 %v113
    %137 = vmatprep.subr.bf16.mxu0 0
    %138 = vmatpush1.bf16.xpose.msra.mxu0 %v114
    %139 = vmatprep.subr.bf16.mxu0 0
    %140 = vmatpush1.bf16.xpose.msra.mxu0 0
    %141 = vmatprep.subr.bf16.mxu0 0
    %142 = vmatpush1.bf16.xpose.msra.mxu0 0
    %143 = vmatprep.subr.bf16.mxu0 0
    %144 = vmatpush1.bf16.xpose.msra.mxu0 0
    %145 = vmatprep.subr.bf16.mxu0 0
    %146 = vmatpush1.bf16.xpose.msra.mxu0 0
    %147 = vmatprep.subr.bf16.mxu0 0
    %148 = vmatpush1.bf16.xpose.msra.mxu0 0
    %149 = vmatprep.subr.bf16.mxu0 0
    %150 = vmatpush1.bf16.xpose.msra.mxu0 0
    %151 = vmatprep.subr.bf16.mxu0 0
    %152 = vmatpush1.bf16.xpose.msra.mxu0 0
    %153 = vmatprep.subr.bf16.mxu0 0
    %154 = vmatpush1.bf16.xpose.msra.mxu0 0
    %155 = vmatprep.mubr.bf16.mxu0 0
    %156 = vmatmul.mubr.bf16.gmra.mrb[0].mxu0 %v58
    %v157 = vpop.f32.mrb[0].mxu0
    %v158 = vadd.f32 0.0, %v157
    %v159 = vpop.f32.mrb[0].mxu0
    %v160 = vpop.f32.mrb[0].mxu0
    %v161 = vpop.f32.mrb[0].mxu0
    %162 = vdwg.mxu0
    %v163 = vpack.c.bf16 %v158, %v158
    %v164 = vld [vmem:[#allocation7] sm:$0xf]
    %v165 = vld [vmem:[#allocation7 + $0x4] sm:$0xf]
    %v166 = vld [vmem:[#allocation7 + $0x8] sm:$0xf]
    %v167 = vld [vmem:[#allocation7 + $0xc] sm:$0xf]
    %v168 = vld [vmem:[#allocation7 + $0x10] sm:$0xf]
    %v169 = vld [vmem:[#allocation7 + $0x14] sm:$0xf]
    %v170 = vld [vmem:[#allocation7 + $0x18] sm:$0xf]
    %v171 = vld [vmem:[#allocation7 + $0x1c] sm:$0xf]
    %v172 = vld [vmem:[#allocation7 + $0x20] sm:$0xf]
    %v173 = vld [vmem:[#allocation7 + $0x24] sm:$0xf]
    %v174 = vld [vmem:[#allocation7 + $0x28] sm:$0xf]
    %v175 = vld [vmem:[#allocation7 + $0x2c] sm:$0xf]
    %v176 = vld [vmem:[#allocation7 + $0x30] sm:$0xf]
    %v177 = vld [vmem:[#allocation7 + $0x34] sm:$0xf]
    %v178 = vld [vmem:[#allocation7 + $0x38] sm:$0xf]
    %v179 = vld [vmem:[#allocation7 + $0x3c] sm:$0xf]
    %v180 = vld [vmem:[%s3] sm:$0x1]
    %v197 = vunpack.c.l.b16 %v164
    %v198 = vunpack.c.l.b16 %v165
    %v199 = vunpack.c.l.b16 %v166
    %v200 = vunpack.c.l.b16 %v167
    %v201 = vunpack.c.l.b16 %v168
    %v202 = vunpack.c.l.b16 %v169
    %v203 = vunpack.c.l.b16 %v170
    %v204 = vunpack.c.l.b16 %v171
    %v205 = vunpack.c.l.b16 %v172
    %v206 = vunpack.c.l.b16 %v173
    %v207 = vunpack.c.l.b16 %v174
    %v208 = vunpack.c.l.b16 %v175
    %v209 = vunpack.c.l.b16 %v176
    %v210 = vunpack.c.l.b16 %v177
    %v211 = vunpack.c.l.b16 %v178
    %v212 = vunpack.c.l.b16 %v179
    %v213 = vpack.c.b16 %v198, %v197
    %v214 = vpack.c.b16 %v200, %v199
    %v215 = vpack.c.b16 %v202, %v201
    %v216 = vpack.c.b16 %v204, %v203
    %v217 = vpack.c.b16 %v206, %v205
    %v218 = vpack.c.b16 %v208, %v207
    %v219 = vpack.c.b16 %v210, %v209
    %v220 = vpack.c.b16 %v212, %v211
    %229 = vmatprep.subr.bf16.mxu0 0
    %230 = vmatpush1.bf16.msra.mxu0 %v213
    %231 = vmatprep.subr.bf16.mxu0 0
    %232 = vmatpush1.bf16.msra.mxu0 %v214
    %233 = vmatprep.subr.bf16.mxu0 0
    %234 = vmatpush1.bf16.msra.mxu0 %v215
    %235 = vmatprep.subr.bf16.mxu0 0
    %236 = vmatpush1.bf16.msra.mxu0 %v216
    %237 = vmatprep.subr.bf16.mxu0 0
    %238 = vmatpush1.bf16.msra.mxu0 %v217
    %239 = vmatprep.subr.bf16.mxu0 0
    %240 = vmatpush1.bf16.msra.mxu0 %v218
    %241 = vmatprep.subr.bf16.mxu0 0
    %242 = vmatpush1.bf16.msra.mxu0 %v219
    %243 = vmatprep.subr.bf16.mxu0 0
    %244 = vmatpush1.bf16.msra.mxu0 %v220
    %245 = vmatprep.subr.bf16.mxu0 0
    %246 = vmatpush1.bf16.msra.mxu0 0
    %247 = vmatprep.subr.bf16.mxu0 0
    %248 = vmatpush1.bf16.msra.mxu0 0
    %249 = vmatprep.subr.bf16.mxu0 0
    %250 = vmatpush1.bf16.msra.mxu0 0
    %251 = vmatprep.subr.bf16.mxu0 0
    %252 = vmatpush1.bf16.msra.mxu0 0
    %253 = vmatprep.subr.bf16.mxu0 0
    %254 = vmatpush1.bf16.msra.mxu0 0
    %255 = vmatprep.subr.bf16.mxu0 0
    %256 = vmatpush1.bf16.msra.mxu0 0
    %257 = vmatprep.subr.bf16.mxu0 0
    %258 = vmatpush1.bf16.msra.mxu0 0
    %259 = vmatprep.subr.bf16.mxu0 0
    %260 = vmatpush1.bf16.msra.mxu0 0
    %261 = vmatprep.mubr.bf16.mxu0 0
    %262 = vmatmul.mubr.bf16.gmra.mrb[0].mxu0 %v163
    %v263 = vpop.f32.mrb[0].mxu0
    %v264 = vadd.f32 %v180, %v263
    %v265 = vpop.f32.mrb[0].mxu0
    %v266 = vpop.f32.mrb[0].mxu0
    %v267 = vpop.f32.mrb[0].mxu0
    %268 = vdwg.mxu0
    %269 = vst [vmem:[#allocation8] sm:$0x1] %v264
    // Predicated region
    $region30: #{tpu_custom_call.1} parent=1 // pred_check
      _
    $region31: #{tpu_custom_call.1} parent=1 // pred_check_branch
      %271 = sbr.rel (0) target = $region33
    $region32: #{tpu_custom_call.1} parent=1 // pred_region
      %s273 = ssub.s32 16, 16
      %274 = vsyncadd [#allocation4], %s273
      %s276 = sshll.u32 [#allocation8], 4
      %s277 = int_to_ptr.vmem [resolvable:$true] %s276
      %279 = dma.vmem_to_hbm [thread:$0]  %s277, 16, %s4, [#allocation4]
    $region33: #{tpu_custom_call.1} parent=1 // pred_fallthru
      _
    // Predicated region
    $region34: #{tpu_custom_call.1} parent=1 // pred_check
      _
    $region35: #{tpu_custom_call.1} parent=1 // pred_check_branch
      %281 = sbr.rel (0) target = $region37
    $region36: #{tpu_custom_call.1} parent=1 // pred_region
      %282 = dma.done [#allocation4], 16
    $region37: #{tpu_custom_call.1} parent=1 // pred_fallthru
      _
    %283 = vsyncpa [#allocation3], 1
    %284 = vsyncpa [#allocation6], 1
    %285 = vsyncpa [#allocation4], 1

</llo_original>
